<compile_context>
chip_gen: v7x
topology: tpu7x:2x2x1
jax: 0.10.0
libtpu: 0.0.40
codegen_flags: <defaults>
</compile_context>

<pallas_src>
import jax
import jax.numpy as jnp
from jax import lax
from jax.experimental import pallas as pl
from jax.experimental.pallas import tpu as pltpu
import numpy as np


# ---------------------------------------------------------------------------
# Pallas kernel: fused (sigmoid-Linear) x2 + Linear + LogSoftmax, batch on lanes
# ---------------------------------------------------------------------------
def _combined_classifier_kernel(
    x_ref,    # (TILE_B, n_outer)    f32  (streamed block; cast to bf16 here)
    w1_ref,   # (n_hid1, n_outer)    bf16 (torch layout, VMEM-resident)
    b1_ref,   # (n_hid1, 1)          f32
    w2_ref,   # (n_hid2, n_hid1)     bf16
    b2_ref,   # (n_hid2, 1)          f32
    w3_ref,   # (n_classes, n_hid2)  bf16
    b3_ref,   # (n_classes, 1)       f32
    o_ref,    # (n_classes, TILE_B)  f32  class-major, lane-dense output block
):
    # In-kernel bf16 cast of the streamed f32 tile (hides under the DMA).
    x_bf = x_ref[...].astype(jnp.bfloat16)

    # Layer 1: h1^T = W1 @ x^T  -> (n_hid1, TILE_B).
    # The x transpose is folded into the matmul (contract dim 1 of both
    # operands, an "NT" matmul), so the whole chain is lane-dense with no
    # explicit XLU transpose of the big x tile.
    h1 = lax.dot_general(
        w1_ref[...], x_bf,
        dimension_numbers=(((1,), (1,)), ((), ())),
        preferred_element_type=jnp.float32)
    h1 = jax.nn.sigmoid(h1 + b1_ref[...])            # f32 elementwise

    # Layer 2: (n_hid2, n_hid1) @ (n_hid1, TILE_B)
    h2 = jnp.dot(w2_ref[...], h1.astype(jnp.bfloat16),
                 preferred_element_type=jnp.float32)
    h2 = jax.nn.sigmoid(h2 + b2_ref[...])

    # Softmax linear: (n_classes, n_hid2) @ (n_hid2, TILE_B)
    logits = jnp.dot(w3_ref[...], h2.astype(jnp.bfloat16),
                     preferred_element_type=jnp.float32) + b3_ref[...]

    # LogSoftmax over the class axis (axis 0 in this class-major layout).
    # Numerically stable; one exp-sum + one log per column.
    m = jnp.max(logits, axis=0, keepdims=True)        # (1, TILE_B)
    shifted = logits - m
    lse = jnp.log(jnp.sum(jnp.exp(shifted), axis=0, keepdims=True))
    o_ref[...] = shifted - lse                        # unmasked lane-dense store


# ---------------------------------------------------------------------------
# One-time parameter preparation: weights stay in torch (out, in) layout, cast
# to bf16 for the MXU; biases stay f32, reshaped to (out, 1) for the
# class-major / batch-on-lanes layout.
# ---------------------------------------------------------------------------
def prepare_params(params):
    return {
        "w1": jnp.asarray(params["w1"]).astype(jnp.bfloat16),
        "w2": jnp.asarray(params["w2"]).astype(jnp.bfloat16),
        "w3": jnp.asarray(params["w3"]).astype(jnp.bfloat16),
        "b1": jnp.asarray(params["b1"]).reshape(-1, 1).astype(jnp.float32),
        "b2": jnp.asarray(params["b2"]).reshape(-1, 1).astype(jnp.float32),
        "b3": jnp.asarray(params["b3"]).reshape(-1, 1).astype(jnp.float32),
    }


def _choose_tile(B, tile_b):
    """Pick a batch tile: big (overhead-amortizing), multiple of 128 when the
    grid has >1 step, and >= 2 grid steps for large B (v7x's two TensorCores)."""
    if B <= 128:
        return B                           # single full-batch block (legal)
    tb = (min(tile_b, B) // 128) * 128
    if tb >= B:
        # Would collapse the grid to a single step; split so the "parallel"
        # batch axis has work for both TensorCores on v7x.
        tb = ((pl.cdiv(B, 2) + 127) // 128) * 128
    return max(tb, 128)


def combined_classifier_forward(inputs, prepped, *, tile_b=8192, class_major=False):
    """inputs: any shape flattening to (-1, n_outer). prepped: prepare_params()."""
    n_hid1, n_outer = prepped["w1"].shape
    n_hid2 = prepped["w2"].shape[0]
    n_classes = prepped["w3"].shape[0]

    # Flatten like torch .view(-1, n_outer); keep native f32 — no wrapper-side
    # bf16 cast pass over HBM.
    x = inputs.reshape(-1, n_outer)
    if x.dtype != jnp.float32:
        x = x.astype(jnp.float32)
    B = x.shape[0]

    tb = _choose_tile(B, tile_b)
    grid = (pl.cdiv(B, tb),)

    cost = pl.CostEstimate(
        flops=2 * B * (n_outer * n_hid1 + n_hid1 * n_hid2 + n_hid2 * n_classes),
        transcendentals=B * (n_hid1 + n_hid2 + n_classes),
        bytes_accessed=(
            B * n_outer * 4                          # x stream (f32)
            + B * n_classes * 4                      # class-major output (f32)
            + (n_outer * n_hid1 + n_hid1 * n_hid2 + n_hid2 * n_classes) * 2
            + (n_hid1 + n_hid2 + n_classes) * 4      # weights (bf16) + biases
        ),
    )

    out_cm = pl.pallas_call(
        _combined_classifier_kernel,
        out_shape=jax.ShapeDtypeStruct((n_classes, B), jnp.float32),
        grid=grid,
        in_specs=[
            pl.BlockSpec((tb, n_outer), lambda i: (i, 0)),        # x (streamed)
            pl.BlockSpec((n_hid1, n_outer), lambda i: (0, 0)),    # w1 (resident)
            pl.BlockSpec((n_hid1, 1), lambda i: (0, 0)),          # b1
            pl.BlockSpec((n_hid2, n_hid1), lambda i: (0, 0)),     # w2
            pl.BlockSpec((n_hid2, 1), lambda i: (0, 0)),          # b2
            pl.BlockSpec((n_classes, n_hid2), lambda i: (0, 0)),  # w3
            pl.BlockSpec((n_classes, 1), lambda i: (0, 0)),       # b3
        ],
        out_specs=pl.BlockSpec((n_classes, tb), lambda i: (0, i)),
        compiler_params=pltpu.CompilerParams(
            dimension_semantics=("parallel",),
            vmem_limit_bytes=32 * 1024 * 1024,   # safe on v5e 16MiB default, v7x 64MiB
        ),
        cost_estimate=cost,
    )(x, prepped["w1"], prepped["b1"], prepped["w2"], prepped["b2"],
      prepped["w3"], prepped["b3"])

    if class_major:
        return out_cm                      # (n_classes, B) — no transpose pass
    return out_cm.T                        # module semantics: (B, n_classes)


# ---------------------------------------------------------------------------
# Deterministic parameter init (PyTorch nn.Linear default: U(-1/sqrt(in), 1/sqrt(in)))
# ---------------------------------------------------------------------------
def init_params(key, n_outer, n_hid1, n_hid2, n_classes):
    ks = jax.random.split(key, 6)

    def linear(kw, kb, fan_in, fan_out):
        bound = 1.0 / np.sqrt(fan_in)
        w = jax.random.uniform(kw, (fan_out, fan_in), jnp.float32, -bound, bound)
        b = jax.random.uniform(kb, (fan_out,), jnp.float32, -bound, bound)
        return w, b

    w1, b1 = linear(ks[0], ks[1], n_outer, n_hid1)
    w2, b2 = linear(ks[2], ks[3], n_hid1, n_hid2)
    w3, b3 = linear(ks[4], ks[5], n_hid2, n_classes)
    return {"w1": w1, "b1": b1, "w2": w2, "b2": b2, "w3": w3, "b3": b3}


# ---------------------------------------------------------------------------
# Pure-JAX f32 reference for correctness check
# ---------------------------------------------------------------------------
def reference_forward(inputs, params):
    n_outer = params["w1"].shape[1]
    x = inputs.reshape(-1, n_outer).astype(jnp.float32)
    x = jax.nn.sigmoid(x @ params["w1"].T + params["b1"])
    x = jax.nn.sigmoid(x @ params["w2"].T + params["b2"])
    x = x @ params["w3"].T + params["b3"]
    return jax.nn.log_softmax(x, axis=-1)


if __name__ == "__main__":
    # Model dims implied by the module:
    #   l1_model.n_outer = 64, l1_model.n_hid1 = 32
    #   l2_model.n_outer = 32, l2_model.n_hid1 = 16
    #   sm_model.n_in    = 16, sm_model.n_classes = 10
    n_outer, n_hid1, n_hid2, n_classes = 64, 32, 16, 10

    key = jax.random.PRNGKey(0)
    k_in1, k_in2, k_par = jax.random.split(key, 3)

    params = init_params(k_par, n_outer, n_hid1, n_hid2, n_classes)
    prepped = prepare_params(params)   # one-time weight/bias layout prep

    # bf16 MXU operands vs f32 reference -> ~1e-2 relative on log-probs.
    tol = dict(rtol=3e-2, atol=3e-2)

    # Check 1: tiny batch consistent with the module (B=2, 4x4x4 -> 64 feats),
    # single grid step with block == full batch.
    inputs_small = jax.random.normal(k_in1, (2, 4, 4, 4), jnp.float32)
    out_small = jax.block_until_ready(combined_classifier_forward(inputs_small, prepped))
    np.testing.assert_allclose(
        np.asarray(out_small), np.asarray(reference_forward(inputs_small, params)), **tol)

    # Check 2: B=1000 with default tile_b -> tb=896, grid=2, ragged tail of 104
    # rows (actually exercises the multi-step grid AND the masked ragged block).
    inputs_big = jax.random.normal(k_in2, (1000, 4, 4, 4), jnp.float32)
    out_big = jax.block_until_ready(combined_classifier_forward(inputs_big, prepped))
    np.testing.assert_allclose(
        np.asarray(out_big), np.asarray(reference_forward(inputs_big, params)), **tol)

    # Check 3: force a small tile (tb=256 -> 4 grid steps, 232-row ragged tail)
    # to exercise the weight-resident / x-streamed pipeline over several steps.
    out_tiled = jax.block_until_ready(
        combined_classifier_forward(inputs_big, prepped, tile_b=256))
    np.testing.assert_allclose(
        np.asarray(out_tiled), np.asarray(reference_forward(inputs_big, params)), **tol)

    print("KERNEL_OK")
</pallas_src>

<mosaic_0001>
module attributes {stable_mosaic.version = 11 : i64} {
  func.func @_combined_classifier_kernel(%arg0: i32, %arg1: memref<2x64xf32, #tpu.memory_space<vmem>>, %arg2: memref<32x64xbf16, #tpu.memory_space<vmem>>, %arg3: memref<32x1xf32, #tpu.memory_space<vmem>>, %arg4: memref<16x32xbf16, #tpu.memory_space<vmem>>, %arg5: memref<16x1xf32, #tpu.memory_space<vmem>>, %arg6: memref<10x16xbf16, #tpu.memory_space<vmem>>, %arg7: memref<10x1xf32, #tpu.memory_space<vmem>>, %arg8: memref<10x2xf32, #tpu.memory_space<vmem>>) attributes {dimension_semantics = [#tpu.dimension_semantics<parallel>], iteration_bounds = array<i64: 1>, scalar_prefetch = 0 : i64, scratch_operands = 0 : i64, tpu.core_type = #tpu.core_type<tc>, window_params = [{transform_indices = @transform_0, window_bounds = array<i64: 2, 64>}, {pipeline_mode = #tpu.pipeline_mode<synchronous>, transform_indices = @transform_1, window_bounds = array<i64: 32, 64>}, {pipeline_mode = #tpu.pipeline_mode<synchronous>, transform_indices = @transform_2, window_bounds = array<i64: 32, 1>}, {pipeline_mode = #tpu.pipeline_mode<synchronous>, transform_indices = @transform_3, window_bounds = array<i64: 16, 32>}, {pipeline_mode = #tpu.pipeline_mode<synchronous>, transform_indices = @transform_4, window_bounds = array<i64: 16, 1>}, {pipeline_mode = #tpu.pipeline_mode<synchronous>, transform_indices = @transform_5, window_bounds = array<i64: 10, 16>}, {pipeline_mode = #tpu.pipeline_mode<synchronous>, transform_indices = @transform_6, window_bounds = array<i64: 10, 1>}, {transform_indices = @transform_7, window_bounds = array<i64: 10, 2>}]} {
    %c0 = arith.constant 0 : index
    %c0_0 = arith.constant 0 : index
    %0 = vector.load %arg1[%c0, %c0_0] : memref<2x64xf32, #tpu.memory_space<vmem>>, vector<2x64xf32>
    %1 = arith.truncf %0 : vector<2x64xf32> to vector<2x64xbf16>
    %c0_1 = arith.constant 0 : index
    %c0_2 = arith.constant 0 : index
    %2 = vector.load %arg2[%c0_1, %c0_2] : memref<32x64xbf16, #tpu.memory_space<vmem>>, vector<32x64xbf16>
    %cst = arith.constant dense<0.000000e+00> : vector<32x2xf32>
    %3 = tpu.matmul %2, %1, %cst {dimension_numbers = #tpu.dot_dimension_numbers<[1], [1], [0], [0], [0, 0, 1, 0], [], []>} : vector<32x64xbf16>, vector<2x64xbf16>, vector<32x2xf32> -> vector<32x2xf32>
    %c0_3 = arith.constant 0 : index
    %c0_4 = arith.constant 0 : index
    %4 = vector.load %arg3[%c0_3, %c0_4] : memref<32x1xf32, #tpu.memory_space<vmem>>, vector<32x1xf32>
    %5 = vector.broadcast %4 : vector<32x1xf32> to vector<32x2xf32>
    %6 = arith.addf %3, %5 : vector<32x2xf32>
    %7 = arith.negf %6 : vector<32x2xf32>
    %8 = math.exp %7 : vector<32x2xf32>
    %cst_5 = arith.constant 1.000000e+00 : f32
    %9 = vector.broadcast %cst_5 : f32 to vector<32x2xf32>
    %10 = arith.addf %9, %8 : vector<32x2xf32>
    %11 = arith.divf %9, %10 : vector<32x2xf32>
    %c0_6 = arith.constant 0 : index
    %c0_7 = arith.constant 0 : index
    %12 = vector.load %arg4[%c0_6, %c0_7] : memref<16x32xbf16, #tpu.memory_space<vmem>>, vector<16x32xbf16>
    %13 = arith.truncf %11 : vector<32x2xf32> to vector<32x2xbf16>
    %cst_8 = arith.constant dense<0.000000e+00> : vector<16x2xf32>
    %14 = tpu.matmul %12, %13, %cst_8 {dimension_numbers = #tpu.dot_dimension_numbers<[1], [0], [0], [1], [0, 0, 1, 1], [], []>} : vector<16x32xbf16>, vector<32x2xbf16>, vector<16x2xf32> -> vector<16x2xf32>
    %c0_9 = arith.constant 0 : index
    %c0_10 = arith.constant 0 : index
    %15 = vector.load %arg5[%c0_9, %c0_10] : memref<16x1xf32, #tpu.memory_space<vmem>>, vector<16x1xf32>
    %16 = vector.broadcast %15 : vector<16x1xf32> to vector<16x2xf32>
    %17 = arith.addf %14, %16 : vector<16x2xf32>
    %18 = arith.negf %17 : vector<16x2xf32>
    %19 = math.exp %18 : vector<16x2xf32>
    %cst_11 = arith.constant 1.000000e+00 : f32
    %20 = vector.broadcast %cst_11 : f32 to vector<16x2xf32>
    %21 = arith.addf %20, %19 : vector<16x2xf32>
    %22 = arith.divf %20, %21 : vector<16x2xf32>
    %c0_12 = arith.constant 0 : index
    %c0_13 = arith.constant 0 : index
    %23 = vector.load %arg6[%c0_12, %c0_13] : memref<10x16xbf16, #tpu.memory_space<vmem>>, vector<10x16xbf16>
    %24 = arith.truncf %22 : vector<16x2xf32> to vector<16x2xbf16>
    %cst_14 = arith.constant dense<0.000000e+00> : vector<10x2xf32>
    %25 = tpu.matmul %23, %24, %cst_14 {dimension_numbers = #tpu.dot_dimension_numbers<[1], [0], [0], [1], [0, 0, 1, 1], [], []>} : vector<10x16xbf16>, vector<16x2xbf16>, vector<10x2xf32> -> vector<10x2xf32>
    %c0_15 = arith.constant 0 : index
    %c0_16 = arith.constant 0 : index
    %26 = vector.load %arg7[%c0_15, %c0_16] : memref<10x1xf32, #tpu.memory_space<vmem>>, vector<10x1xf32>
    %27 = vector.broadcast %26 : vector<10x1xf32> to vector<10x2xf32>
    %28 = arith.addf %25, %27 : vector<10x2xf32>
    %cst_17 = arith.constant dense<0xFF800000> : vector<2xf32>
    %29 = vector.multi_reduction <maximumf>, %28, %cst_17 [0] : vector<10x2xf32> to vector<2xf32>
    %30 = vector.shape_cast %29 : vector<2xf32> to vector<1x2xf32>
    %31 = vector.broadcast %30 : vector<1x2xf32> to vector<10x2xf32>
    %32 = arith.subf %28, %31 : vector<10x2xf32>
    %33 = math.exp %32 : vector<10x2xf32>
    %cst_18 = arith.constant dense<0.000000e+00> : vector<2xf32>
    %34 = vector.multi_reduction <add>, %33, %cst_18 [0] : vector<10x2xf32> to vector<2xf32>
    %35 = vector.shape_cast %34 : vector<2xf32> to vector<1x2xf32>
    %36 = math.log %35 : vector<1x2xf32>
    %37 = vector.broadcast %36 : vector<1x2xf32> to vector<10x2xf32>
    %38 = arith.subf %32, %37 : vector<10x2xf32>
    %c0_19 = arith.constant 0 : index
    %c0_20 = arith.constant 0 : index
    %39 = vector.load %arg8[%c0_19, %c0_20] : memref<10x2xf32, #tpu.memory_space<vmem>>, vector<10x2xf32>
    tpu.vector_store %arg8[%c0_19, %c0_20], %38 {strides = array<i32>} : memref<10x2xf32, #tpu.memory_space<vmem>>, vector<10x2xf32>,
    return
  }
  func.func @transform_0(%arg0: i32) -> (i32, i32) {
    %c0_i32 = arith.constant 0 : i32
    %c0_i32_0 = arith.constant 0 : i32
    return %arg0, %c0_i32 : i32, i32
  }
  func.func @transform_1(%arg0: i32) -> (i32, i32) {
    %c0_i32 = arith.constant 0 : i32
    %c0_i32_0 = arith.constant 0 : i32
    %c0_i32_1 = arith.constant 0 : i32
    return %c0_i32, %c0_i32_0 : i32, i32
  }
  func.func @transform_2(%arg0: i32) -> (i32, i32) {
    %c0_i32 = arith.constant 0 : i32
    %c0_i32_0 = arith.constant 0 : i32
    %c0_i32_1 = arith.constant 0 : i32
    return %c0_i32, %c0_i32_0 : i32, i32
  }
  func.func @transform_3(%arg0: i32) -> (i32, i32) {
    %c0_i32 = arith.constant 0 : i32
    %c0_i32_0 = arith.constant 0 : i32
    %c0_i32_1 = arith.constant 0 : i32
    return %c0_i32, %c0_i32_0 : i32, i32
  }
  func.func @transform_4(%arg0: i32) -> (i32, i32) {
    %c0_i32 = arith.constant 0 : i32
    %c0_i32_0 = arith.constant 0 : i32
    %c0_i32_1 = arith.constant 0 : i32
    return %c0_i32, %c0_i32_0 : i32, i32
  }
  func.func @transform_5(%arg0: i32) -> (i32, i32) {
    %c0_i32 = arith.constant 0 : i32
    %c0_i32_0 = arith.constant 0 : i32
    %c0_i32_1 = arith.constant 0 : i32
    return %c0_i32, %c0_i32_0 : i32, i32
  }
  func.func @transform_6(%arg0: i32) -> (i32, i32) {
    %c0_i32 = arith.constant 0 : i32
    %c0_i32_0 = arith.constant 0 : i32
    %c0_i32_1 = arith.constant 0 : i32
    return %c0_i32, %c0_i32_0 : i32, i32
  }
  func.func @transform_7(%arg0: i32) -> (i32, i32) {
    %c0_i32 = arith.constant 0 : i32
    %c0_i32_0 = arith.constant 0 : i32
    return %c0_i32, %arg0 : i32, i32
  }
}

</mosaic_0001>

<llo_original>
// kernel: tpu_custom_call.1
$region0: #{tpu_custom_call.1}
  #allocation0 [shape = 'u32[]', space=smem, size = 0x4, offset = 0x4, fixed_abs, tag = 'smem constant byte address 0x4 - core index']
  #allocation1 [shape = 'u32[144,128]{1,0:T(1,128)}', space=vmem, size = 0x12000, scoped, tag = 'internal scratch']
  %s0 = inlined_call_operand.vmem [shape: f32[2,64], index: 0, kind: input, shape index: {}]
  %s1 = inlined_call_operand.vmem [shape: bf16[32,64], index: 1, kind: input, shape index: {}]
  %s2 = inlined_call_operand.vmem [shape: f32[32,1], index: 2, kind: input, shape index: {}]
  %s3 = inlined_call_operand.vmem [shape: bf16[16,32], index: 3, kind: input, shape index: {}]
  %s4 = inlined_call_operand.vmem [shape: f32[16,1], index: 4, kind: input, shape index: {}]
  %s5 = inlined_call_operand.vmem [shape: bf16[10,16], index: 5, kind: input, shape index: {}]
  %s6 = inlined_call_operand.vmem [shape: f32[10,1], index: 6, kind: input, shape index: {}]
  %s7 = inlined_call_operand.vmem [shape: f32[10,2], index: 7, kind: output, shape index: {}]
  %s8 = sld [smem:[#allocation0]]
  $region38: #{tpu_custom_call.1} parent=0
    _
  %s10 = ssub.s32 1, %s8
  %s11 = scalar_select 0, %s10, %s8
  // Predicated region
  $region2: #{tpu_custom_call.1} parent=0 // pred_check
    _
  $region3: #{tpu_custom_call.1} parent=0 // pred_check_branch
    %13 = sbr.rel (0) target = $region5
  $region4: #{tpu_custom_call.1} parent=0 // pred_region
    _
  $region5: #{tpu_custom_call.1} parent=0 // pred_fallthru
    _
  // Predicated region
  $region6: #{tpu_custom_call.1} parent=0 // pred_check
    _
  $region7: #{tpu_custom_call.1} parent=0 // pred_check_branch
    %15 = sbr.rel (0) target = $region9
  $region8: #{tpu_custom_call.1} parent=0 // pred_region
    _
  $region9: #{tpu_custom_call.1} parent=0 // pred_fallthru
    _
  // Predicated region
  $region10: #{tpu_custom_call.1} parent=0 // pred_check
    _
  $region11: #{tpu_custom_call.1} parent=0 // pred_check_branch
    %17 = sbr.rel (0) target = $region13
  $region12: #{tpu_custom_call.1} parent=0 // pred_region
    _
  $region13: #{tpu_custom_call.1} parent=0 // pred_fallthru
    _
  // Predicated region
  $region14: #{tpu_custom_call.1} parent=0 // pred_check
    _
  $region15: #{tpu_custom_call.1} parent=0 // pred_check_branch
    %19 = sbr.rel (0) target = $region17
  $region16: #{tpu_custom_call.1} parent=0 // pred_region
    _
  $region17: #{tpu_custom_call.1} parent=0 // pred_fallthru
    _
  // Predicated region
  $region18: #{tpu_custom_call.1} parent=0 // pred_check
    _
  $region19: #{tpu_custom_call.1} parent=0 // pred_check_branch
    %21 = sbr.rel (0) target = $region21
  $region20: #{tpu_custom_call.1} parent=0 // pred_region
    _
  $region21: #{tpu_custom_call.1} parent=0 // pred_fallthru
    _
  // Predicated region
  $region22: #{tpu_custom_call.1} parent=0 // pred_check
    _
  $region23: #{tpu_custom_call.1} parent=0 // pred_check_branch
    %23 = sbr.rel (0) target = $region25
  $region24: #{tpu_custom_call.1} parent=0 // pred_region
    _
  $region25: #{tpu_custom_call.1} parent=0 // pred_fallthru
    _
  // Predicated region
  $region26: #{tpu_custom_call.1} parent=0 // pred_check
    _
  $region27: #{tpu_custom_call.1} parent=0 // pred_check_branch
    %25 = sbr.rel (0) target = $region29
  $region28: #{tpu_custom_call.1} parent=0 // pred_region
    _
  $region29: #{tpu_custom_call.1} parent=0 // pred_fallthru
    _
  %v27 = vld [vmem:[%s0] sm:$0x3]
  %v28 = vpack.c.bf16 %v27, %v27
  %v29 = vld [vmem:[%s1] sm:$0xf]
  %v30 = vld [vmem:[%s1 + $0x4] sm:$0xf]
  %v31 = vld [vmem:[%s1 + $0x8] sm:$0xf]
  %v32 = vld [vmem:[%s1 + $0xc] sm:$0xf]
  %v33 = vld [vmem:[%s2] sm:$0xff]
  %v34 = vld [vmem:[%s2 + $0x8] sm:$0xff]
  %v35 = vld [vmem:[%s2 + $0x10] sm:$0xff]
  %v36 = vld [vmem:[%s2 + $0x18] sm:$0xff]
  %38 = vset.pattern.permute.xlu0 0
  %39 = vperm.xlu0 %38, %v33
  %v40 = vpop.permute.xlu0 %39
  %43 = vset.pattern.permute.xlu0 0
  %44 = vperm.xlu0 %43, %v34
  %v45 = vpop.permute.xlu0 %44
  %48 = vset.pattern.permute.xlu0 0
  %49 = vperm.xlu0 %48, %v35
  %v50 = vpop.permute.xlu0 %49
  %53 = vset.pattern.permute.xlu0 0
  %54 = vperm.xlu0 %53, %v36
  %v55 = vpop.permute.xlu0 %54
  %v61 = vunpack.c.l.b16 %v29
  %v62 = vunpack.c.l.b16 %v30
  %v63 = vunpack.c.l.b16 %v31
  %v64 = vunpack.c.l.b16 %v32
  %v65 = vpack.c.b16 %v62, %v61
  %v66 = vpack.c.b16 %v64, %v63
  %vm67 = vcmask 523264
  %v69 = vsel %vm67, %v65, 0
  %v72 = vsel %vm67, %v66, 0
  %v75 = vsel %vm67, %v28, 0
  %77 = vmatprep.subr.bf16.mxu0 0
  %78 = vmatpush1.bf16.xpose.msra.mxu0 %v75
  %79 = vmatprep.subr.bf16.mxu0 0
  %80 = vmatpush1.bf16.xpose.msra.mxu0 0
  %81 = vmatprep.subr.bf16.mxu0 0
  %82 = vmatpush1.bf16.xpose.msra.mxu0 0
  %83 = vmatprep.subr.bf16.mxu0 0
  %84 = vmatpush1.bf16.xpose.msra.mxu0 0
  %85 = vmatprep.subr.bf16.mxu0 0
  %86 = vmatpush1.bf16.xpose.msra.mxu0 0
  %87 = vmatprep.subr.bf16.mxu0 0
  %88 = vmatpush1.bf16.xpose.msra.mxu0 0
  %89 = vmatprep.subr.bf16.mxu0 0
  %90 = vmatpush1.bf16.xpose.msra.mxu0 0
  %91 = vmatprep.subr.bf16.mxu0 0
  %92 = vmatpush1.bf16.xpose.msra.mxu0 0
  %93 = vmatprep.subr.bf16.mxu0 0
  %94 = vmatpush1.bf16.xpose.msra.mxu0 0
  %95 = vmatprep.subr.bf16.mxu0 0
  %96 = vmatpush1.bf16.xpose.msra.mxu0 0
  %97 = vmatprep.subr.bf16.mxu0 0
  %98 = vmatpush1.bf16.xpose.msra.mxu0 0
  %99 = vmatprep.subr.bf16.mxu0 0
  %100 = vmatpush1.bf16.xpose.msra.mxu0 0
  %101 = vmatprep.subr.bf16.mxu0 0
  %102 = vmatpush1.bf16.xpose.msra.mxu0 0
  %103 = vmatprep.subr.bf16.mxu0 0
  %104 = vmatpush1.bf16.xpose.msra.mxu0 0
  %105 = vmatprep.subr.bf16.mxu0 0
  %106 = vmatpush1.bf16.xpose.msra.mxu0 0
  %107 = vmatprep.subr.bf16.mxu0 0
  %108 = vmatpush1.bf16.xpose.msra.mxu0 0
  %109 = vmatprep.mubr.bf16.mxu0 0
  %110 = vmatmul.mubr.bf16.gmra.mrb[0].mxu0 %v69
  %v111 = vpop.f32.mrb[0].mxu0
  %v112 = vadd.f32 %v40, %v111
  %v113 = vpop.f32.mrb[0].mxu0
  %v114 = vpop.f32.mrb[0].mxu0
  %v115 = vadd.f32 %v45, %v114
  %v116 = vpop.f32.mrb[0].mxu0
  %117 = vmatprep.mubr.bf16.mxu0 0
  %118 = vmatmul.mubr.bf16.gmra.mrb[0].mxu0 %v72
  %v119 = vpop.f32.mrb[0].mxu0
  %v120 = vadd.f32 %v50, %v119
  %v121 = vpop.f32.mrb[0].mxu0
  %v122 = vpop.f32.mrb[0].mxu0
  %v123 = vadd.f32 %v55, %v122
  %v124 = vpop.f32.mrb[0].mxu0
  %125 = vdwg.mxu0
  %v126 = vxor.u32 %v112, 2147483648
  %v127 = vxor.u32 %v115, 2147483648
  %v128 = vxor.u32 %v120, 2147483648
  %v129 = vxor.u32 %v123, 2147483648
  %v130 = vmul.f32 %v126, 1.442695
  %v131 = vpow.pop %v130
  %v132 = vmul.f32 %v127, 1.442695
  %v133 = vpow.pop %v132
  %v134 = vmul.f32 %v128, 1.442695
  %v135 = vpow.pop %v134
  %v136 = vmul.f32 %v129, 1.442695
  %v137 = vpow.pop %v136
  %v138 = vadd.f32 %v131, 1.0
  %v139 = vadd.f32 %v133, 1.0
  %v140 = vadd.f32 %v135, 1.0
  %v141 = vadd.f32 %v137, 1.0
  %v142 = vrcp.pop %v138
  %v143 = vmul.f32 1.0, %v142
  %v144 = vrcp.pop %v139
  %v145 = vmul.f32 1.0, %v144
  %v146 = vrcp.pop %v140
  %v147 = vmul.f32 1.0, %v146
  %v148 = vrcp.pop %v141
  %v149 = vmul.f32 1.0, %v148
  %v150 = vld [vmem:[%s3] sm:$0xf]
  %v151 = vld [vmem:[%s3 + $0x4] sm:$0xf]
  %v152 = vpack.c.bf16 %v145, %v143
  %v153 = vpack.c.bf16 %v149, %v147
  %v154 = vld [vmem:[%s4] sm:$0xff]
  %v155 = vld [vmem:[%s4 + $0x8] sm:$0xff]
  %157 = vset.pattern.permute.xlu0 0
  %158 = vperm.xlu0 %157, %v154
  %v159 = vpop.permute.xlu0 %158
  %162 = vset.pattern.permute.xlu0 0
  %163 = vperm.xlu0 %162, %v155
  %v164 = vpop.permute.xlu0 %163
  %v168 = vunpack.c.l.b16 %v150
  %v169 = vunpack.c.l.b16 %v151
  %v170 = vpack.c.b16 %v169, %v168
  %vm171 = vcmask 261120
  %v173 = vsel %vm171, %v170, 0
  %175 = vmatprep.subr.bf16.mxu0 0
  %176 = vmatpush1.bf16.msra.mxu0 %v152
  %177 = vmatprep.subr.bf16.mxu0 0
  %178 = vmatpush1.bf16.msra.mxu0 %v153
  %179 = vmatprep.subr.bf16.mxu0 0
  %180 = vmatpush1.bf16.msra.mxu0 0
  %181 = vmatprep.subr.bf16.mxu0 0
  %182 = vmatpush1.bf16.msra.mxu0 0
  %183 = vmatprep.subr.bf16.mxu0 0
  %184 = vmatpush1.bf16.msra.mxu0 0
  %185 = vmatprep.subr.bf16.mxu0 0
  %186 = vmatpush1.bf16.msra.mxu0 0
  %187 = vmatprep.subr.bf16.mxu0 0
  %188 = vmatpush1.bf16.msra.mxu0 0
  %189 = vmatprep.subr.bf16.mxu0 0
  %190 = vmatpush1.bf16.msra.mxu0 0
  %191 = vmatprep.subr.bf16.mxu0 0
  %192 = vmatpush1.bf16.msra.mxu0 0
  %193 = vmatprep.subr.bf16.mxu0 0
  %194 = vmatpush1.bf16.msra.mxu0 0
  %195 = vmatprep.subr.bf16.mxu0 0
  %196 = vmatpush1.bf16.msra.mxu0 0
  %197 = vmatprep.subr.bf16.mxu0 0
  %198 = vmatpush1.bf16.msra.mxu0 0
  %199 = vmatprep.subr.bf16.mxu0 0
  %200 = vmatpush1.bf16.msra.mxu0 0
  %201 = vmatprep.subr.bf16.mxu0 0
  %202 = vmatpush1.bf16.msra.mxu0 0
  %203 = vmatprep.subr.bf16.mxu0 0
  %204 = vmatpush1.bf16.msra.mxu0 0
  %205 = vmatprep.subr.bf16.mxu0 0
  %206 = vmatpush1.bf16.msra.mxu0 0
  %207 = vmatprep.mubr.bf16.mxu0 0
  %208 = vmatmul.mubr.bf16.gmra.mrb[0].mxu0 %v173
  %v209 = vpop.f32.mrb[0].mxu0
  %v210 = vadd.f32 %v159, %v209
  %v211 = vpop.f32.mrb[0].mxu0
  %v212 = vpop.f32.mrb[0].mxu0
  %v213 = vadd.f32 %v164, %v212
  %v214 = vpop.f32.mrb[0].mxu0
  %215 = vdwg.mxu0
  %v216 = vxor.u32 %v210, 2147483648
  %v217 = vxor.u32 %v213, 2147483648
  %v218 = vmul.f32 %v216, 1.442695
  %v219 = vpow.pop %v218
  %v220 = vmul.f32 %v217, 1.442695
  %v221 = vpow.pop %v220
  %v222 = vadd.f32 %v219, 1.0
  %v223 = vadd.f32 %v221, 1.0
  %v224 = vrcp.pop %v222
  %v225 = vmul.f32 1.0, %v224
  %v226 = vrcp.pop %v223
  %v227 = vmul.f32 1.0, %v226
  %v228 = vld [vmem:[%s5] sm:$0xf]
  %v229 = vld [vmem:[%s5 + $0x4] sm:$0x1]
  %v230 = vpack.c.bf16 %v227, %v225
  %v231 = vld [vmem:[%s6] sm:$0xff]
  %v232 = vld [vmem:[%s6 + $0x8] sm:$0x3]
  %234 = vset.pattern.permute.xlu0 0
  %235 = vperm.xlu0 %234, %v231
  %v236 = vpop.permute.xlu0 %235
  %239 = vset.pattern.permute.xlu0 0
  %240 = vperm.xlu0 %239, %v232
  %v241 = vpop.permute.xlu0 %240
  %v245 = vunpack.c.l.b16 %v228
  %v246 = vunpack.c.l.b16 %v229
  %v247 = vpack.c.b16 %v246, %v245
  %vm248 = vcmask 130048
  %v250 = vsel %vm248, %v247, 0
  %252 = vmatprep.subr.bf16.mxu0 0
  %253 = vmatpush1.bf16.msra.mxu0 %v230
  %254 = vmatprep.subr.bf16.mxu0 0
  %255 = vmatpush1.bf16.msra.mxu0 0
  %256 = vmatprep.subr.bf16.mxu0 0
  %257 = vmatpush1.bf16.msra.mxu0 0
  %258 = vmatprep.subr.bf16.mxu0 0
  %259 = vmatpush1.bf16.msra.mxu0 0
  %260 = vmatprep.subr.bf16.mxu0 0
  %261 = vmatpush1.bf16.msra.mxu0 0
  %262 = vmatprep.subr.bf16.mxu0 0
  %263 = vmatpush1.bf16.msra.mxu0 0
  %264 = vmatprep.subr.bf16.mxu0 0
  %265 = vmatpush1.bf16.msra.mxu0 0
  %266 = vmatprep.subr.bf16.mxu0 0
  %267 = vmatpush1.bf16.msra.mxu0 0
  %268 = vmatprep.subr.bf16.mxu0 0
  %269 = vmatpush1.bf16.msra.mxu0 0
  %270 = vmatprep.subr.bf16.mxu0 0
  %271 = vmatpush1.bf16.msra.mxu0 0
  %272 = vmatprep.subr.bf16.mxu0 0
  %273 = vmatpush1.bf16.msra.mxu0 0
  %274 = vmatprep.subr.bf16.mxu0 0
  %275 = vmatpush1.bf16.msra.mxu0 0
  %276 = vmatprep.subr.bf16.mxu0 0
  %277 = vmatpush1.bf16.msra.mxu0 0
  %278 = vmatprep.subr.bf16.mxu0 0
  %279 = vmatpush1.bf16.msra.mxu0 0
  %280 = vmatprep.subr.bf16.mxu0 0
  %281 = vmatpush1.bf16.msra.mxu0 0
  %282 = vmatprep.subr.bf16.mxu0 0
  %283 = vmatpush1.bf16.msra.mxu0 0
  %284 = vmatprep.mubr.bf16.mxu0 0
  %285 = vmatmul.mubr.bf16.gmra.mrb[0].mxu0 %v250
  %v286 = vpop.f32.mrb[0].mxu0
  %v287 = vadd.f32 %v236, %v286
  %v288 = vpop.f32.mrb[0].mxu0
  %v289 = vpop.f32.mrb[0].mxu0
  %v290 = vadd.f32 %v241, %v289
  %v291 = vpop.f32.mrb[0].mxu0
  %292 = vdwg.mxu0
  %vm293 = vcmask 15360
  %v294 = vsel %vm293, %v287, -inf
  %vm295 = vcmask 9216
  %v296 = vsel %vm295, %v290, -inf
  %v297 = vmax.f32 %v294, %v296
  %v298 = vrot.slane %v297, 4
  %v299 = vmax.f32 %v297, %v298
  %v300 = vrot.slane %v299, 2
  %v301 = vmax.f32 %v299, %v300
  %v302 = vrot.slane %v301, 1
  %v303 = vmax.f32 %v301, %v302
  %v304 = vsub.f32 %v287, %v303
  %v305 = vsub.f32 %v290, %v303
  %v306 = vmul.f32 %v304, 1.442695
  %v307 = vpow.pop %v306
  %v308 = vmul.f32 %v305, 1.442695
  %v309 = vpow.pop %v308
  %v310 = vsel %vm293, %v307, 0.0
  %v311 = vsel %vm295, %v309, 0.0
  %v312 = vadd.f32 %v310, %v311
  %v313 = vrot.slane %v312, 4
  %v314 = vadd.f32 %v312, %v313
  %v315 = vrot.slane %v314, 2
  %v316 = vadd.f32 %v314, %v315
  %v317 = vrot.slane %v316, 1
  %v318 = vadd.f32 %v316, %v317
  %v319 = vlog2.pop %v318
  %v320 = vmul.f32 %v319, 0.6931472
  %v321 = vsub.f32 %v304, %v320
  %v322 = vsub.f32 %v305, %v320
  %323 = vst.msk [vmem:[%s7] sm:$0xff] %vm293, %v321
  %324 = vst.msk [vmem:[%s7 + $0x8] sm:$0x3] %vm295, %v322
  // Predicated region
  $region30: #{tpu_custom_call.1} parent=0 // pred_check
    _
  $region31: #{tpu_custom_call.1} parent=0 // pred_check_branch
    %326 = sbr.rel (0) target = $region33
  $region32: #{tpu_custom_call.1} parent=0 // pred_region
    _
  $region33: #{tpu_custom_call.1} parent=0 // pred_fallthru
    _
  // Predicated region
  $region34: #{tpu_custom_call.1} parent=0 // pred_check
    _
  $region35: #{tpu_custom_call.1} parent=0 // pred_check_branch
    %328 = sbr.rel (0) target = $region37
  $region36: #{tpu_custom_call.1} parent=0 // pred_region
    _
  $region37: #{tpu_custom_call.1} parent=0 // pred_fallthru
    _

</llo_original>
